<compile_context>
chip_gen: v6e
topology: v6e:2x2x1
jax: 0.10.0
libtpu: 0.0.40
codegen_flags: <defaults>
</compile_context>

<pallas_src>
import jax
import jax.numpy as jnp
from jax.experimental import pallas as pl
from jax.experimental.pallas import tpu as pltpu

_LANES = 128
_SKIP_KERNEL_BELOW_BYTES = 1 << 20  # below this, forward() is a pure identity return


def _copy_kernel(src_ref, dst_ref):
    # Identity copy of one tile (HBM -> VMEM -> HBM, auto-pipelined by BlockSpec).
    dst_ref[...] = src_ref[...]


def _block_bytes_budget() -> int:
    """Per-block byte budget. 4 live buffers (2x double-buffered input + output)
    must fit the scoped-VMEM default of the generation with headroom."""
    try:
        kind = jax.devices()[0].device_kind.lower()
    except Exception:
        kind = ""
    if "v7" in kind:
        return 6 << 20  # 4 x 6 MiB = 24 MiB << 64 MiB physical (32 MiB scoped)
    if "v6" in kind:
        return 7 << 20  # 4 x 7 MiB = 28 MiB < 32 MiB scoped (128 MiB physical)
    # v5e (16 MiB scoped default) or unknown: stay conservative.
    return 3 << 20      # 4 x 3 MiB = 12 MiB, headroom for Mosaic internal scratch


def _sublane_multiple(dtype) -> int:
    # Min second-minor tile dim: 8 rows for 4-byte, 16 for 2-byte, 32 for 1-byte.
    return max(8, 32 // jnp.dtype(dtype).itemsize)


def _pick_block_rows(rows: int, max_rows: int, mult: int) -> int:
    """Largest block_rows <= max_rows that is a multiple of `mult` and divides
    `rows` exactly (no partial trailing tile).  Among divisors, prefer one whose
    tile count is even (balanced across v7x's two TensorCores) as long as it is
    within 2x of the largest divisor.  Falls back to a plain multiple of `mult`
    (partial last tile, still correct) if no divisor exists."""
    best = None
    b = (max_rows // mult) * mult
    while b >= mult:
        if rows % b == 0:
            if best is None:
                best = b
            n_tiles = rows // b
            if n_tiles % 2 == 0 and 2 * b >= best:
                return b
        b -= mult
    if best is not None:
        return best
    return max(mult, (max_rows // mult) * mult)


def _copy_lane_dense(param: jax.Array) -> jax.Array:
    """Identity copy of a parameter whose element count is a multiple of 128."""
    n = param.size
    cols = next(c for c in (2048, 1024, 512, 256, 128) if n % c == 0)
    rows = n // cols
    flat = param.reshape(rows, cols)

    itemsize = jnp.dtype(param.dtype).itemsize
    budget = _block_bytes_budget()
    max_rows = max(1, budget // (cols * itemsize))

    if rows <= max_rows:
        # Whole slab is one full-extent block (always layout-legal): no grid needed.
        out = pl.pallas_call(
            _copy_kernel,
            out_shape=jax.ShapeDtypeStruct((rows, cols), param.dtype),
        )(flat)
        return out.reshape(param.shape)

    mult = _sublane_multiple(param.dtype)
    block_rows = _pick_block_rows(rows, max_rows, mult)
    grid = (pl.cdiv(rows, block_rows),)

    out = pl.pallas_call(
        _copy_kernel,
        out_shape=jax.ShapeDtypeStruct((rows, cols), param.dtype),
        grid=grid,
        in_specs=[pl.BlockSpec((block_rows, cols), lambda i: (i, 0))],
        out_specs=pl.BlockSpec((block_rows, cols), lambda i: (i, 0)),
        compiler_params=pltpu.CompilerParams(
            # Independent row tiles: shard the grid across TensorCores on v7x.
            dimension_semantics=("parallel",),
        ),
    )(flat)
    return out.reshape(param.shape)


def _copy_odd(param: jax.Array) -> jax.Array:
    """Identity copy for parameters whose element count is NOT a multiple of 128."""
    n = param.size
    itemsize = jnp.dtype(param.dtype).itemsize
    if n * itemsize <= _block_bytes_budget():
        # Small: one full-extent 2-D block (always layout-legal), no grid wrapper.
        flat = param.reshape(1, n)
        out = pl.pallas_call(
            _copy_kernel,
            out_shape=jax.ShapeDtypeStruct((1, n), param.dtype),
        )(flat)
        return out.reshape(param.shape)
    # Large & non-128-aligned: pad to a lane-dense slab in the wrapper, copy tiled,
    # slice back.  (The pad/slice cost an extra XLA pass but keep VMEM safe.)
    pad = (-n) % _LANES
    flat = jnp.pad(param.reshape(-1), (0, pad))
    out = _copy_lane_dense(flat)
    return out[:n].reshape(param.shape)


def sample_forward(param: jax.Array, *, force_kernel: bool = False) -> jax.Array:
    """Pallas equivalent of Sample.forward(): returns the stored parameter."""
    n = param.size
    if n == 0:
        return param
    nbytes = n * jnp.dtype(param.dtype).itemsize
    if not force_kernel and nbytes < _SKIP_KERNEL_BELOW_BYTES:
        # forward() is an identity: returning the parameter is the zero-cost path.
        return param
    if n % _LANES != 0:
        return _copy_odd(param)
    return _copy_lane_dense(param)


class SamplePallas:
    """Mirror of the PyTorch `Sample` module: holds a parameter, forward returns it."""

    def __init__(self, *dim, key=None, dtype=jnp.float32):
        if key is None:
            key = jax.random.PRNGKey(0)
        # Deterministic stand-in for torch.randn(*dim).
        self.sample = jax.random.normal(key, dim, dtype=dtype)

    def __call__(self, *, force_kernel: bool = False) -> jax.Array:
        return sample_forward(self.sample, force_kernel=force_kernel)


if __name__ == "__main__":
    key = jax.random.PRNGKey(0)
    k1, k2, k3, k4 = jax.random.split(key, 4)

    # 1) Canonical small case (2, 4, 16, 16): default path is the zero-cost identity
    #    (no kernel launch); force_kernel=True exercises the lane-dense copy kernel.
    m_small = SamplePallas(2, 4, 16, 16, key=k1)
    out_fast = jax.block_until_ready(m_small())
    out_kern = jax.block_until_ready(m_small(force_kernel=True))
    assert out_fast.shape == m_small.sample.shape
    assert out_fast.dtype == m_small.sample.dtype
    assert bool(jnp.all(out_fast == m_small.sample))
    assert out_kern.shape == m_small.sample.shape
    assert bool(jnp.all(out_kern == m_small.sample))

    # 2) 8 MiB f32 parameter: exceeds the threshold -> tiled lane-dense kernel with a
    #    balanced, divisor-aligned grid (even tile count for v7x's two TensorCores).
    m_big = SamplePallas(2048, 1024, key=k2)
    out_big = jax.block_until_ready(m_big())
    assert bool(jnp.all(out_big == m_big.sample))

    # 3) 8 MiB bf16 parameter: exercises dtype-aware sublane rounding (16-row multiple).
    m_bf16 = SamplePallas(2048, 2048, key=k3, dtype=jnp.bfloat16)
    out_bf16 = jax.block_until_ready(m_bf16())
    assert out_bf16.dtype == jnp.bfloat16
    assert bool(jnp.all(out_bf16 == m_bf16.sample))

    # 4) Odd total size (not a multiple of 128): small full-extent single-block fallback.
    m_odd = SamplePallas(2, 3, 5, key=k4)
    out_odd = jax.block_until_ready(m_odd(force_kernel=True))
    assert out_odd.shape == m_odd.sample.shape
    assert bool(jnp.all(out_odd == m_odd.sample))

    print("KERNEL_OK")
</pallas_src>

<mosaic_0001>
module attributes {stable_mosaic.version = 11 : i64} {
  func.func @_copy_kernel(%arg0: memref<1x2048xf32, #tpu.memory_space<vmem>>, %arg1: memref<1x2048xf32, #tpu.memory_space<vmem>>) attributes {dimension_semantics = [], scalar_prefetch = 0 : i64, scratch_operands = 0 : i64, tpu.core_type = #tpu.core_type<tc>} {
    %c0 = arith.constant 0 : index
    %c0_0 = arith.constant 0 : index
    %0 = vector.load %arg0[%c0, %c0_0] : memref<1x2048xf32, #tpu.memory_space<vmem>>, vector<1x2048xf32>
    %c0_1 = arith.constant 0 : index
    %c0_2 = arith.constant 0 : index
    %1 = vector.load %arg1[%c0_1, %c0_2] : memref<1x2048xf32, #tpu.memory_space<vmem>>, vector<1x2048xf32>
    tpu.vector_store %arg1[%c0_1, %c0_2], %0 {strides = array<i32>} : memref<1x2048xf32, #tpu.memory_space<vmem>>, vector<1x2048xf32>,
    return
  }
}

</mosaic_0001>

<llo_original>
// kernel: tpu_custom_call.1
$region0: #{tpu_custom_call.1}
  #allocation0 [shape = 'u32[]', space=smem, size = 0x4, offset = 0x4, fixed_abs, tag = 'smem constant byte address 0x4 - core index']
  #allocation1 [shape = 'u32[144,128]{1,0:T(1,128)}', space=vmem, size = 0x12000, scoped, tag = 'internal scratch']
  %s0 = inlined_call_operand.hbm [shape: f32[1,2048], index: 0, kind: input, shape index: {}]
  %s1 = inlined_call_operand.hbm [shape: f32[1,2048], index: 1, kind: output, shape index: {}]
  %s2 = sld [smem:[#allocation0]]
  $region18: #{tpu_custom_call.1} parent=0
    _
  %s4 = ssub.s32 1, %s2
  %s5 = scalar_select 0, %s4, %s2
  $region1: #{tpu_custom_call.1} parent=0
    #allocation2 [shape = 'u8[8192]{0}', space=vmem, size = 0x2000, scoped, tag = 'input window, operand 0, single buffered']
    #allocation3 [shape = 's32[1]{0}', space=sflag, size = 0x4, scoped, tag = 'scoped memory for tpu_custom_call.1']
    #allocation4 [shape = 's32[1]{0}', space=sflag, size = 0x4, scoped, tag = 'scoped memory for tpu_custom_call.1']
    #allocation5 [shape = 'u8[8192]{0}', space=vmem, size = 0x2000, scoped, tag = 'output window, operand 0, single buffered']
    %6 = vsyncpa [#allocation3], 0
    %7 = vsyncpa [#allocation4], 0
    // Predicated region
    $region2: #{tpu_custom_call.1} parent=1 // pred_check
      _
    $region3: #{tpu_custom_call.1} parent=1 // pred_check_branch
      %9 = sbr.rel (0) target = $region5
    $region4: #{tpu_custom_call.1} parent=1 // pred_region
      %s11 = ssub.s32 256, 256
      %12 = vsyncadd [#allocation3], %s11
      %s14 = sshll.u32 [#allocation2], 4
      %s15 = int_to_ptr.vmem [resolvable:$true] %s14
      %17 = dma.hbm_to_vmem [thread:$0]  %s0, 256, %s15, [#allocation3]
    $region5: #{tpu_custom_call.1} parent=1 // pred_fallthru
      _
    // Predicated region
    $region6: #{tpu_custom_call.1} parent=1 // pred_check
      _
    $region7: #{tpu_custom_call.1} parent=1 // pred_check_branch
      %19 = sbr.rel (0) target = $region9
    $region8: #{tpu_custom_call.1} parent=1 // pred_region
      %20 = dma.done [#allocation3], 256
    $region9: #{tpu_custom_call.1} parent=1 // pred_fallthru
      _
    %v21 = vld [vmem:[#allocation2] sm:$0xff]
    %v22 = vld [vmem:[#allocation2 + $0x8] sm:$0xff]
    %23 = vst [vmem:[#allocation5] sm:$0xff] %v21
    %24 = vst [vmem:[#allocation5 + $0x8] sm:$0xff] %v22
    // Predicated region
    $region10: #{tpu_custom_call.1} parent=1 // pred_check
      _
    $region11: #{tpu_custom_call.1} parent=1 // pred_check_branch
      %26 = sbr.rel (0) target = $region13
    $region12: #{tpu_custom_call.1} parent=1 // pred_region
      %s28 = ssub.s32 256, 256
      %29 = vsyncadd [#allocation4], %s28
      %s31 = sshll.u32 [#allocation5], 4
      %s32 = int_to_ptr.vmem [resolvable:$true] %s31
      %34 = dma.vmem_to_hbm [thread:$0]  %s32, 256, %s1, [#allocation4]
    $region13: #{tpu_custom_call.1} parent=1 // pred_fallthru
      _
    // Predicated region
    $region14: #{tpu_custom_call.1} parent=1 // pred_check
      _
    $region15: #{tpu_custom_call.1} parent=1 // pred_check_branch
      %36 = sbr.rel (0) target = $region17
    $region16: #{tpu_custom_call.1} parent=1 // pred_region
      %37 = dma.done [#allocation4], 256
    $region17: #{tpu_custom_call.1} parent=1 // pred_fallthru
      _
    %38 = vsyncpa [#allocation3], 1
    %39 = vsyncpa [#allocation4], 1

</llo_original>
